<compile_context>
chip_gen: v5e
topology: v5e:2x2
jax: 0.10.0
libtpu: 0.0.40
codegen_flags: <defaults>
</compile_context>

<pallas_src>
import functools
import math

import jax
import jax.numpy as jnp
from jax.experimental import pallas as pl
from jax.experimental.pallas import tpu as pltpu

# ----------------------------- small config ---------------------------------
SEQ = 8                  # q_len (number of tokens)
HIDDEN = 64              # config.hidden_size
NUM_HEADS = 4            # config.num_attention_heads
QK_NOPE = 16             # config.qk_nope_head_dim
QK_ROPE = 8              # config.qk_rope_head_dim
QK_HEAD = QK_NOPE + QK_ROPE
V_HEAD = HIDDEN // NUM_HEADS          # v_head_dim = 16
Q_LORA = 32              # config.q_lora_rank
KV_LORA = 32             # config.kv_lora_rank
INTER = 128              # config.intermediate_size
NUM_LAYERS = 4           # config.num_hidden_layers
SCALE_DEPTH = 1.4        # config.scale_depth
RMS_EPS = 1e-6           # config.rms_norm_eps
ROPE_THETA = 10000.0
ATTN_SCALE = QK_HEAD ** (-0.5)
RESID_SCALE = SCALE_DEPTH / math.sqrt(NUM_LAYERS)


# --------------------------- in-kernel helpers -------------------------------
def _rmsnorm(x, w, eps):
    var = jnp.mean(x * x, axis=-1, keepdims=True)
    return x * jax.lax.rsqrt(var + eps) * w


def _rope(x, cos, sin):
    # neox-style (split-half) rotation, matches get_rope default.
    half = x.shape[-1] // 2
    x1 = x[:, :half]
    x2 = x[:, half:]
    return jnp.concatenate([x1 * cos - x2 * sin, x2 * cos + x1 * sin], axis=-1)


# ------------------------- fused decoder-layer kernel ------------------------
def _decoder_layer_kernel(x_ref, cos_ref, sin_ref,
                          w_in_ln_ref, w_a_ref, w_q_a_ln_ref, w_q_b_ref,
                          w_kv_a_ln_ref, w_o_ref, w_post_ln_ref,
                          w_gu_ref, w_down_ref,
                          o_ref, *,
                          num_heads, q_lora, kv_lora, rope_dim, inter,
                          eps, resid_scale):
    bf16 = jnp.bfloat16
    f32 = jnp.float32

    x = x_ref[...]                      # [T, D] f32
    t = x.shape[0]
    cos_s = cos_ref[...]                # [H*T, R/2] (pre-tiled for stacked heads)
    sin_s = sin_ref[...]
    cos1 = cos_s[:t, :]                 # [T, R/2]  (sublane-aligned slice)
    sin1 = sin_s[:t, :]

    # ---- input RMSNorm (f32 elementwise) ----
    h = _rmsnorm(x, w_in_ln_ref[...], eps)

    # ---- fused low-rank projections: one [T,D]@[D, QL+KV+R] bf16 matmul ----
    a = jnp.dot(h.astype(bf16), w_a_ref[...], preferred_element_type=f32)     # [T, QL+KV+R]
    q_a = _rmsnorm(a[:, :q_lora], w_q_a_ln_ref[...], eps)                     # [T, QL]
    v = _rmsnorm(a[:, q_lora:q_lora + kv_lora], w_kv_a_ln_ref[...], eps)      # [T, KV]
    k_pe = _rope(a[:, q_lora + kv_lora:], cos1, sin1)                         # [T, R]

    # ---- fused q_b projection (w_kc absorbed, attn scale pre-folded) ----
    # layout: [all-heads nope (H*KV lanes) | all-heads pe (H*R lanes)]
    q_all = jnp.dot(q_a.astype(bf16), w_q_b_ref[...], preferred_element_type=f32)  # [T, H*KV+H*R]
    nope_w = num_heads * kv_lora

    # head-stack along the sublane axis -> [H*T, KV] and [H*T, R]
    q_nope_s = jnp.concatenate(
        [q_all[:, i * kv_lora:(i + 1) * kv_lora] for i in range(num_heads)], axis=0)
    q_pe_s = jnp.concatenate(
        [q_all[:, nope_w + i * rope_dim:nope_w + (i + 1) * rope_dim]
         for i in range(num_heads)], axis=0)
    q_pe_s = _rope(q_pe_s, cos_s, sin_s)      # one RoPE call for all heads

    # ---- causal MLA attention for all heads in 3 MXU matmuls (split scores) ----
    # TODO(synk): RadixAttention uses a paged KV cache driven by ForwardBatch;
    # here it is realized as plain causal prefill attention over the sequence.
    v_b = v.astype(bf16)
    s = (jnp.dot(q_nope_s.astype(bf16), v_b.T, preferred_element_type=f32) +
         jnp.dot(q_pe_s.astype(bf16), k_pe.astype(bf16).T,
                 preferred_element_type=f32))                                  # [H*T, T]
    row = jax.lax.broadcasted_iota(jnp.int32, (num_heads * t, t), 0)
    col = jax.lax.broadcasted_iota(jnp.int32, (num_heads * t, t), 1)
    s = jnp.where(col <= row % t, s, -1e30)
    m = jnp.max(s, axis=-1, keepdims=True)                                     # f32 softmax
    p = jnp.exp(s - m)
    p = p * pl.reciprocal(jnp.sum(p, axis=-1, keepdims=True), approx=True)
    attn_s = jnp.dot(p.astype(bf16), v_b, preferred_element_type=f32)          # [H*T, KV]

    # un-stack heads to a lane-dense [T, H*KV] slab (sublane-aligned slices)
    attn_cat = jnp.concatenate(
        [attn_s[i * t:(i + 1) * t, :] for i in range(num_heads)], axis=1)      # [T, H*KV]

    # ---- absorbed o_proj (w_vc folded in) + fused scaled residual add ----
    attn_o = jnp.dot(attn_cat.astype(bf16), w_o_ref[...],
                     preferred_element_type=f32)                               # [T, D]
    h1 = x + attn_o * resid_scale

    # ---- post-attention RMSNorm + MLP + fused scaled residual add ----
    h2 = _rmsnorm(h1, w_post_ln_ref[...], eps)
    gu = jnp.dot(h2.astype(bf16), w_gu_ref[...], preferred_element_type=f32)   # [T, 2I]
    gate = gu[:, :inter]
    up = gu[:, inter:]
    act = gate * jax.nn.sigmoid(gate) * up                                     # f32 SiLU
    mlp_out = jnp.dot(act.astype(bf16), w_down_ref[...],
                      preferred_element_type=f32)                              # [T, D]
    o_ref[...] = h1 + mlp_out * resid_scale


# ------------------------------ wrapper --------------------------------------
def _full_spec(shape):
    # whole-array block on a trivial grid
    return pl.BlockSpec(shape, lambda i: tuple(0 for _ in shape))


def minicpm3_decoder_layer(positions, hidden_states, params):
    t, d = hidden_states.shape

    # tiny RoPE tables (trig on positions) built in glue, used inside the kernel.
    half = QK_ROPE // 2
    inv_freq = 1.0 / (ROPE_THETA ** (jnp.arange(half, dtype=jnp.float32) / half))
    freqs = positions.astype(jnp.float32)[:, None] * inv_freq[None, :]    # [T, half]
    cos = jnp.cos(freqs)
    sin = jnp.sin(freqs)
    # pre-tiled for the head-stacked q_pe rotation (free JAX glue)
    cos_s = jnp.tile(cos, (NUM_HEADS, 1))                                  # [H*T, half]
    sin_s = jnp.tile(sin, (NUM_HEADS, 1))

    args = (hidden_states, cos_s, sin_s,
            params["input_ln"], params["a_proj_t"], params["q_a_ln"],
            params["q_b_fused"], params["kv_a_ln"], params["o_abs"],
            params["post_ln"], params["gate_up_t"], params["down_t"])

    out = pl.pallas_call(
        functools.partial(
            _decoder_layer_kernel,
            num_heads=NUM_HEADS, q_lora=Q_LORA, kv_lora=KV_LORA,
            rope_dim=QK_ROPE, inter=INTER, eps=RMS_EPS, resid_scale=RESID_SCALE),
        out_shape=jax.ShapeDtypeStruct((t, d), jnp.float32),
        grid=(1,),
        in_specs=[_full_spec(a.shape) for a in args],
        out_specs=_full_spec((t, d)),
        compiler_params=pltpu.CompilerParams(dimension_semantics=("arbitrary",)),
    )(*args)
    return out, None


# ------------------------------ params ----------------------------------------
def init_params(key):
    ks = jax.random.split(key, 8)
    s = 0.05
    # raw weights in torch nn.Linear layout [D_out, D_in]
    q_a_proj = jax.random.normal(ks[0], (Q_LORA, HIDDEN), jnp.float32) * s
    q_b_proj = jax.random.normal(ks[1], (NUM_HEADS * QK_HEAD, Q_LORA), jnp.float32) * s
    kv_a_proj = jax.random.normal(ks[2], (KV_LORA + QK_ROPE, HIDDEN), jnp.float32) * s
    kv_b_proj = jax.random.normal(ks[3], (NUM_HEADS * (QK_NOPE + V_HEAD), KV_LORA), jnp.float32) * s
    o_proj = jax.random.normal(ks[4], (HIDDEN, NUM_HEADS * V_HEAD), jnp.float32) * s
    gate_up_proj = jax.random.normal(ks[5], (2 * INTER, HIDDEN), jnp.float32) * s
    down_proj = jax.random.normal(ks[6], (HIDDEN, INTER), jnp.float32) * s

    # Absorbed MLA weights (fp32 branch of the reference: plain torch.bmm).
    kv_b = kv_b_proj.reshape(NUM_HEADS, QK_NOPE + V_HEAD, KV_LORA)
    w_kc = kv_b[:, :QK_NOPE, :]                                   # [H, nope, kv_lora]
    w_vc = jnp.transpose(kv_b[:, QK_NOPE:, :], (0, 2, 1))         # [H, kv_lora, v_head]

    q_b = q_b_proj.reshape(NUM_HEADS, QK_HEAD, Q_LORA)
    q_b_nope = q_b[:, :QK_NOPE, :]                                # [H, nope, q_lora]
    q_b_pe = q_b[:, QK_NOPE:, :]                                  # [H, rope, q_lora]

    # fold w_kc into the nope part of q_b_proj: block h = q_b_nope[h].T @ w_kc[h]
    q_nope_abs = jnp.einsum("hnq,hnk->qhk", q_b_nope, w_kc).reshape(
        Q_LORA, NUM_HEADS * KV_LORA)                              # [Q_LORA, H*KV_LORA]
    # rope part of q_b_proj, pre-transposed to [Q_LORA, H*QK_ROPE]
    q_pe_t = jnp.transpose(q_b_pe, (2, 0, 1)).reshape(Q_LORA, NUM_HEADS * QK_ROPE)
    # fuse nope + pe parts into ONE q_b weight and pre-fold the attention scale
    # (scaling q is equivalent to scaling scores; RoPE is linear).
    q_b_fused = jnp.concatenate([q_nope_abs, q_pe_t], axis=1) * ATTN_SCALE

    # fold w_vc into o_proj: rows [h*KV:(h+1)*KV] = w_vc[h] @ o_proj[:, h*V:(h+1)*V].T
    o_heads = o_proj.reshape(HIDDEN, NUM_HEADS, V_HEAD)
    o_abs = jnp.einsum("hkv,dhv->hkd", w_vc, o_heads).reshape(
        NUM_HEADS * KV_LORA, HIDDEN)                              # [H*KV_LORA, HIDDEN]

    # fuse q_a_proj with kv_a_proj_with_mqa into one [HIDDEN, QL+KV+R] weight
    a_proj_t = jnp.concatenate([q_a_proj.T, kv_a_proj.T], axis=1)

    bf16 = jnp.bfloat16
    return {
        # RMSNorm weights stay f32 (VPU elementwise path)
        "input_ln": jnp.ones((1, HIDDEN), jnp.float32),
        "post_ln": jnp.ones((1, HIDDEN), jnp.float32),
        "q_a_ln": jnp.ones((1, Q_LORA), jnp.float32),
        "kv_a_ln": jnp.ones((1, KV_LORA), jnp.float32),
        # matmul weights stored bf16 (native MXU dtype, half the DMA bytes)
        "a_proj_t": a_proj_t.astype(bf16),        # [HIDDEN, QL+KV+R]
        "q_b_fused": q_b_fused.astype(bf16),      # [Q_LORA, H*KV + H*R]
        "o_abs": o_abs.astype(bf16),              # [H*KV_LORA, HIDDEN]
        "gate_up_t": gate_up_proj.T.astype(bf16),  # [HIDDEN, 2*INTER]
        "down_t": down_proj.T.astype(bf16),        # [INTER, HIDDEN]
    }


# ------------------------------ main -----------------------------------------
if __name__ == "__main__":
    key = jax.random.PRNGKey(0)
    k_h, k_p = jax.random.split(key)
    params = init_params(k_p)

    hidden_states = jax.random.normal(k_h, (SEQ, HIDDEN), jnp.float32)
    positions = jnp.arange(SEQ, dtype=jnp.int32)

    out, _ = minicpm3_decoder_layer(positions, hidden_states, params)
    out = jax.block_until_ready(out)
    assert out.shape == (SEQ, HIDDEN)
    assert bool(jnp.all(jnp.isfinite(out)))
    print("KERNEL_OK")
</pallas_src>

<mosaic_0001>
module attributes {stable_mosaic.version = 11 : i64} {
  func.func @_decoder_layer_kernel(%arg0: i32, %arg1: memref<8x64xf32, #tpu.memory_space<vmem>>, %arg2: memref<32x4xf32, #tpu.memory_space<vmem>>, %arg3: memref<32x4xf32, #tpu.memory_space<vmem>>, %arg4: memref<1x64xf32, #tpu.memory_space<vmem>>, %arg5: memref<64x72xbf16, #tpu.memory_space<vmem>>, %arg6: memref<1x32xf32, #tpu.memory_space<vmem>>, %arg7: memref<32x160xbf16, #tpu.memory_space<vmem>>, %arg8: memref<1x32xf32, #tpu.memory_space<vmem>>, %arg9: memref<128x64xbf16, #tpu.memory_space<vmem>>, %arg10: memref<1x64xf32, #tpu.memory_space<vmem>>, %arg11: memref<64x256xbf16, #tpu.memory_space<vmem>>, %arg12: memref<128x64xbf16, #tpu.memory_space<vmem>>, %arg13: memref<8x64xf32, #tpu.memory_space<vmem>>) attributes {dimension_semantics = [#tpu.dimension_semantics<arbitrary>], iteration_bounds = array<i64: 1>, scalar_prefetch = 0 : i64, scratch_operands = 0 : i64, tpu.core_type = #tpu.core_type<tc>, window_params = [{pipeline_mode = #tpu.pipeline_mode<synchronous>, transform_indices = @transform_0, window_bounds = array<i64: 8, 64>}, {pipeline_mode = #tpu.pipeline_mode<synchronous>, transform_indices = @transform_1, window_bounds = array<i64: 32, 4>}, {pipeline_mode = #tpu.pipeline_mode<synchronous>, transform_indices = @transform_2, window_bounds = array<i64: 32, 4>}, {pipeline_mode = #tpu.pipeline_mode<synchronous>, transform_indices = @transform_3, window_bounds = array<i64: 1, 64>}, {pipeline_mode = #tpu.pipeline_mode<synchronous>, transform_indices = @transform_4, window_bounds = array<i64: 64, 72>}, {pipeline_mode = #tpu.pipeline_mode<synchronous>, transform_indices = @transform_5, window_bounds = array<i64: 1, 32>}, {pipeline_mode = #tpu.pipeline_mode<synchronous>, transform_indices = @transform_6, window_bounds = array<i64: 32, 160>}, {pipeline_mode = #tpu.pipeline_mode<synchronous>, transform_indices = @transform_7, window_bounds = array<i64: 1, 32>}, {pipeline_mode = #tpu.pipeline_mode<synchronous>, transform_indices = @transform_8, window_bounds = array<i64: 128, 64>}, {pipeline_mode = #tpu.pipeline_mode<synchronous>, transform_indices = @transform_9, window_bounds = array<i64: 1, 64>}, {pipeline_mode = #tpu.pipeline_mode<synchronous>, transform_indices = @transform_10, window_bounds = array<i64: 64, 256>}, {pipeline_mode = #tpu.pipeline_mode<synchronous>, transform_indices = @transform_11, window_bounds = array<i64: 128, 64>}, {pipeline_mode = #tpu.pipeline_mode<synchronous>, transform_indices = @transform_12, window_bounds = array<i64: 8, 64>}]} {
    %c0 = arith.constant 0 : index
    %c0_0 = arith.constant 0 : index
    %0 = vector.load %arg1[%c0, %c0_0] : memref<8x64xf32, #tpu.memory_space<vmem>>, vector<8x64xf32>
    %c0_1 = arith.constant 0 : index
    %c0_2 = arith.constant 0 : index
    %1 = vector.load %arg2[%c0_1, %c0_2] : memref<32x4xf32, #tpu.memory_space<vmem>>, vector<32x4xf32>
    %c0_3 = arith.constant 0 : index
    %c0_4 = arith.constant 0 : index
    %2 = vector.load %arg3[%c0_3, %c0_4] : memref<32x4xf32, #tpu.memory_space<vmem>>, vector<32x4xf32>
    %3 = vector.extract_strided_slice %1 {offsets = [0, 0], sizes = [8, 4], strides = [1, 1]} : vector<32x4xf32> to vector<8x4xf32>
    %4 = vector.extract_strided_slice %2 {offsets = [0, 0], sizes = [8, 4], strides = [1, 1]} : vector<32x4xf32> to vector<8x4xf32>
    %c0_5 = arith.constant 0 : index
    %c0_6 = arith.constant 0 : index
    %5 = vector.load %arg4[%c0_5, %c0_6] : memref<1x64xf32, #tpu.memory_space<vmem>>, vector<1x64xf32>
    %6 = arith.mulf %0, %0 : vector<8x64xf32>
    %cst = arith.constant dense<0.000000e+00> : vector<8xf32>
    %7 = vector.multi_reduction <add>, %6, %cst [1] : vector<8x64xf32> to vector<8xf32>
    %8 = vector.shape_cast %7 : vector<8xf32> to vector<8x1xf32>
    %cst_7 = arith.constant 6.400000e+01 : f32
    %9 = vector.broadcast %cst_7 : f32 to vector<8x1xf32>
    %10 = arith.divf %8, %9 : vector<8x1xf32>
    %cst_8 = arith.constant 9.99999997E-7 : f32
    %11 = vector.broadcast %cst_8 : f32 to vector<8x1xf32>
    %12 = arith.addf %10, %11 : vector<8x1xf32>
    %13 = math.rsqrt %12 : vector<8x1xf32>
    %14 = vector.broadcast %13 : vector<8x1xf32> to vector<8x64xf32>
    %15 = arith.mulf %0, %14 : vector<8x64xf32>
    %16 = vector.broadcast %5 : vector<1x64xf32> to vector<8x64xf32>
    %17 = arith.mulf %15, %16 : vector<8x64xf32>
    %18 = arith.truncf %17 : vector<8x64xf32> to vector<8x64xbf16>
    %c0_9 = arith.constant 0 : index
    %c0_10 = arith.constant 0 : index
    %19 = vector.load %arg5[%c0_9, %c0_10] : memref<64x72xbf16, #tpu.memory_space<vmem>>, vector<64x72xbf16>
    %cst_11 = arith.constant dense<0.000000e+00> : vector<8x72xf32>
    %20 = tpu.matmul %18, %19, %cst_11 {dimension_numbers = #tpu.dot_dimension_numbers<[1], [0], [0], [1], [0, 0, 1, 1], [], []>} : vector<8x64xbf16>, vector<64x72xbf16>, vector<8x72xf32> -> vector<8x72xf32>
    %21 = vector.extract_strided_slice %20 {offsets = [0, 0], sizes = [8, 32], strides = [1, 1]} : vector<8x72xf32> to vector<8x32xf32>
    %c0_12 = arith.constant 0 : index
    %c0_13 = arith.constant 0 : index
    %22 = vector.load %arg6[%c0_12, %c0_13] : memref<1x32xf32, #tpu.memory_space<vmem>>, vector<1x32xf32>
    %23 = arith.mulf %21, %21 : vector<8x32xf32>
    %cst_14 = arith.constant dense<0.000000e+00> : vector<8xf32>
    %24 = vector.multi_reduction <add>, %23, %cst_14 [1] : vector<8x32xf32> to vector<8xf32>
    %25 = vector.shape_cast %24 : vector<8xf32> to vector<8x1xf32>
    %cst_15 = arith.constant 3.200000e+01 : f32
    %26 = vector.broadcast %cst_15 : f32 to vector<8x1xf32>
    %27 = arith.divf %25, %26 : vector<8x1xf32>
    %cst_16 = arith.constant 9.99999997E-7 : f32
    %28 = vector.broadcast %cst_16 : f32 to vector<8x1xf32>
    %29 = arith.addf %27, %28 : vector<8x1xf32>
    %30 = math.rsqrt %29 : vector<8x1xf32>
    %31 = vector.broadcast %30 : vector<8x1xf32> to vector<8x32xf32>
    %32 = arith.mulf %21, %31 : vector<8x32xf32>
    %33 = vector.broadcast %22 : vector<1x32xf32> to vector<8x32xf32>
    %34 = arith.mulf %32, %33 : vector<8x32xf32>
    %35 = vector.extract_strided_slice %20 {offsets = [0, 32], sizes = [8, 32], strides = [1, 1]} : vector<8x72xf32> to vector<8x32xf32>
    %c0_17 = arith.constant 0 : index
    %c0_18 = arith.constant 0 : index
    %36 = vector.load %arg8[%c0_17, %c0_18] : memref<1x32xf32, #tpu.memory_space<vmem>>, vector<1x32xf32>
    %37 = arith.mulf %35, %35 : vector<8x32xf32>
    %cst_19 = arith.constant dense<0.000000e+00> : vector<8xf32>
    %38 = vector.multi_reduction <add>, %37, %cst_19 [1] : vector<8x32xf32> to vector<8xf32>
    %39 = vector.shape_cast %38 : vector<8xf32> to vector<8x1xf32>
    %cst_20 = arith.constant 3.200000e+01 : f32
    %40 = vector.broadcast %cst_20 : f32 to vector<8x1xf32>
    %41 = arith.divf %39, %40 : vector<8x1xf32>
    %cst_21 = arith.constant 9.99999997E-7 : f32
    %42 = vector.broadcast %cst_21 : f32 to vector<8x1xf32>
    %43 = arith.addf %41, %42 : vector<8x1xf32>
    %44 = math.rsqrt %43 : vector<8x1xf32>
    %45 = vector.broadcast %44 : vector<8x1xf32> to vector<8x32xf32>
    %46 = arith.mulf %35, %45 : vector<8x32xf32>
    %47 = vector.broadcast %36 : vector<1x32xf32> to vector<8x32xf32>
    %48 = arith.mulf %46, %47 : vector<8x32xf32>
    %49 = vector.extract_strided_slice %20 {offsets = [0, 64], sizes = [8, 8], strides = [1, 1]} : vector<8x72xf32> to vector<8x8xf32>
    %50 = vector.extract_strided_slice %49 {offsets = [0, 0], sizes = [8, 4], strides = [1, 1]} : vector<8x8xf32> to vector<8x4xf32>
    %51 = vector.extract_strided_slice %49 {offsets = [0, 4], sizes = [8, 4], strides = [1, 1]} : vector<8x8xf32> to vector<8x4xf32>
    %52 = arith.mulf %50, %3 : vector<8x4xf32>
    %53 = arith.mulf %51, %4 : vector<8x4xf32>
    %54 = arith.subf %52, %53 : vector<8x4xf32>
    %55 = arith.mulf %51, %3 : vector<8x4xf32>
    %56 = arith.mulf %50, %4 : vector<8x4xf32>
    %57 = arith.addf %55, %56 : vector<8x4xf32>
    %58 = tpu.concatenate %54, %57 in 1 : vector<8x4xf32>, vector<8x4xf32> -> vector<8x8xf32>
    %59 = arith.truncf %34 : vector<8x32xf32> to vector<8x32xbf16>
    %c0_22 = arith.constant 0 : index
    %c0_23 = arith.constant 0 : index
    %60 = vector.load %arg7[%c0_22, %c0_23] : memref<32x160xbf16, #tpu.memory_space<vmem>>, vector<32x160xbf16>
    %cst_24 = arith.constant dense<0.000000e+00> : vector<8x160xf32>
    %61 = tpu.matmul %59, %60, %cst_24 {dimension_numbers = #tpu.dot_dimension_numbers<[1], [0], [0], [1], [0, 0, 1, 1], [], []>} : vector<8x32xbf16>, vector<32x160xbf16>, vector<8x160xf32> -> vector<8x160xf32>
    %62 = vector.extract_strided_slice %61 {offsets = [0, 0], sizes = [8, 32], strides = [1, 1]} : vector<8x160xf32> to vector<8x32xf32>
    %63 = vector.extract_strided_slice %61 {offsets = [0, 32], sizes = [8, 32], strides = [1, 1]} : vector<8x160xf32> to vector<8x32xf32>
    %64 = vector.extract_strided_slice %61 {offsets = [0, 64], sizes = [8, 32], strides = [1, 1]} : vector<8x160xf32> to vector<8x32xf32>
    %65 = vector.extract_strided_slice %61 {offsets = [0, 96], sizes = [8, 32], strides = [1, 1]} : vector<8x160xf32> to vector<8x32xf32>
    %66 = tpu.concatenate %62, %63, %64, %65 in 0 : vector<8x32xf32>, vector<8x32xf32>, vector<8x32xf32>, vector<8x32xf32> -> vector<32x32xf32>
    %67 = vector.extract_strided_slice %61 {offsets = [0, 128], sizes = [8, 8], strides = [1, 1]} : vector<8x160xf32> to vector<8x8xf32>
    %68 = vector.extract_strided_slice %61 {offsets = [0, 136], sizes = [8, 8], strides = [1, 1]} : vector<8x160xf32> to vector<8x8xf32>
    %69 = vector.extract_strided_slice %61 {offsets = [0, 144], sizes = [8, 8], strides = [1, 1]} : vector<8x160xf32> to vector<8x8xf32>
    %70 = vector.extract_strided_slice %61 {offsets = [0, 152], sizes = [8, 8], strides = [1, 1]} : vector<8x160xf32> to vector<8x8xf32>
    %71 = tpu.concatenate %67, %68, %69, %70 in 0 : vector<8x8xf32>, vector<8x8xf32>, vector<8x8xf32>, vector<8x8xf32> -> vector<32x8xf32>
    %72 = vector.extract_strided_slice %71 {offsets = [0, 0], sizes = [32, 4], strides = [1, 1]} : vector<32x8xf32> to vector<32x4xf32>
    %73 = vector.extract_strided_slice %71 {offsets = [0, 4], sizes = [32, 4], strides = [1, 1]} : vector<32x8xf32> to vector<32x4xf32>
    %74 = arith.mulf %72, %1 : vector<32x4xf32>
    %75 = arith.mulf %73, %2 : vector<32x4xf32>
    %76 = arith.subf %74, %75 : vector<32x4xf32>
    %77 = arith.mulf %73, %1 : vector<32x4xf32>
    %78 = arith.mulf %72, %2 : vector<32x4xf32>
    %79 = arith.addf %77, %78 : vector<32x4xf32>
    %80 = tpu.concatenate %76, %79 in 1 : vector<32x4xf32>, vector<32x4xf32> -> vector<32x8xf32>
    %81 = arith.truncf %48 : vector<8x32xf32> to vector<8x32xbf16>
    %82 = arith.truncf %66 : vector<32x32xf32> to vector<32x32xbf16>
    %83 = tpu.transpose %81, [1, 0] : vector<8x32xbf16> -> vector<32x8xbf16>
    %cst_25 = arith.constant dense<0.000000e+00> : vector<32x8xf32>
    %84 = tpu.matmul %82, %83, %cst_25 {dimension_numbers = #tpu.dot_dimension_numbers<[1], [0], [0], [1], [0, 0, 1, 1], [], []>} : vector<32x32xbf16>, vector<32x8xbf16>, vector<32x8xf32> -> vector<32x8xf32>
    %85 = arith.truncf %80 : vector<32x8xf32> to vector<32x8xbf16>
    %86 = arith.truncf %58 : vector<8x8xf32> to vector<8x8xbf16>
    %87 = tpu.transpose %86, [1, 0] : vector<8x8xbf16> -> vector<8x8xbf16>
    %cst_26 = arith.constant dense<0.000000e+00> : vector<32x8xf32>
    %88 = tpu.matmul %85, %87, %cst_26 {dimension_numbers = #tpu.dot_dimension_numbers<[1], [0], [0], [1], [0, 0, 1, 1], [], []>} : vector<32x8xbf16>, vector<8x8xbf16>, vector<32x8xf32> -> vector<32x8xf32>
    %89 = arith.addf %84, %88 : vector<32x8xf32>
    %90 = tpu.iota {dimensions = array<i32: 0>} : vector<32x8xi32>
    %91 = tpu.iota {dimensions = array<i32: 1>} : vector<32x8xi32>
    %c8_i32 = arith.constant 8 : i32
    %c0_i32 = arith.constant 0 : i32
    %92 = arith.cmpi eq, %c8_i32, %c0_i32 : i32
    %c1_i32 = arith.constant 1 : i32
    %93 = arith.select %92, %c1_i32, %c8_i32 : i32
    %94 = vector.broadcast %93 : i32 to vector<32x8xi32>
    %95 = arith.remsi %90, %94 : vector<32x8xi32>
    %c0_i32_27 = arith.constant 0 : i32
    %96 = vector.broadcast %c0_i32_27 : i32 to vector<32x8xi32>
    %97 = arith.cmpi ne, %95, %96 : vector<32x8xi32>
    %c0_i32_28 = arith.constant 0 : i32
    %98 = vector.broadcast %c0_i32_28 : i32 to vector<32x8xi32>
    %99 = arith.cmpi slt, %95, %98 : vector<32x8xi32>
    %c0_i32_29 = arith.constant 0 : i32
    %100 = arith.cmpi slt, %93, %c0_i32_29 : i32
    %101 = vector.broadcast %100 : i1 to vector<32x8xi1>
    %102 = vector.broadcast %101 : vector<32x8xi1> to vector<32x8xi1>
    %103 = arith.xori %99, %102 : vector<32x8xi1>
    %104 = arith.andi %103, %97 : vector<32x8xi1>
    %105 = vector.broadcast %93 : i32 to vector<32x8xi32>
    %106 = arith.addi %95, %105 : vector<32x8xi32>
    %107 = arith.select %104, %106, %95 : vector<32x8xi1>, vector<32x8xi32>
    %108 = arith.cmpi sle, %91, %107 : vector<32x8xi32>
    %cst_30 = arith.constant -1.000000e+30 : f32
    %109 = vector.broadcast %cst_30 : f32 to vector<32x8xf32>
    %110 = arith.select %108, %89, %109 : vector<32x8xi1>, vector<32x8xf32>
    %cst_31 = arith.constant dense<0xFF800000> : vector<32xf32>
    %111 = vector.multi_reduction <maximumf>, %110, %cst_31 [1] : vector<32x8xf32> to vector<32xf32>
    %112 = vector.shape_cast %111 : vector<32xf32> to vector<32x1xf32>
    %113 = vector.broadcast %112 : vector<32x1xf32> to vector<32x8xf32>
    %114 = arith.subf %110, %113 : vector<32x8xf32>
    %115 = math.exp %114 : vector<32x8xf32>
    %cst_32 = arith.constant dense<0.000000e+00> : vector<32xf32>
    %116 = vector.multi_reduction <add>, %115, %cst_32 [1] : vector<32x8xf32> to vector<32xf32>
    %117 = vector.shape_cast %116 : vector<32xf32> to vector<32x1xf32>
    %118 = tpu.reciprocal %117 {approx = true} : vector<32x1xf32> -> vector<32x1xf32>
    %119 = vector.broadcast %118 : vector<32x1xf32> to vector<32x8xf32>
    %120 = arith.mulf %115, %119 : vector<32x8xf32>
    %121 = arith.truncf %120 : vector<32x8xf32> to vector<32x8xbf16>
    %cst_33 = arith.constant dense<0.000000e+00> : vector<32x32xf32>
    %122 = tpu.matmul %121, %81, %cst_33 {dimension_numbers = #tpu.dot_dimension_numbers<[1], [0], [0], [1], [0, 0, 1, 1], [], []>} : vector<32x8xbf16>, vector<8x32xbf16>, vector<32x32xf32> -> vector<32x32xf32>
    %123 = vector.extract_strided_slice %122 {offsets = [0, 0], sizes = [8, 32], strides = [1, 1]} : vector<32x32xf32> to vector<8x32xf32>
    %124 = vector.extract_strided_slice %122 {offsets = [8, 0], sizes = [8, 32], strides = [1, 1]} : vector<32x32xf32> to vector<8x32xf32>
    %125 = vector.extract_strided_slice %122 {offsets = [16, 0], sizes = [8, 32], strides = [1, 1]} : vector<32x32xf32> to vector<8x32xf32>
    %126 = vector.extract_strided_slice %122 {offsets = [24, 0], sizes = [8, 32], strides = [1, 1]} : vector<32x32xf32> to vector<8x32xf32>
    %127 = tpu.concatenate %123, %124, %125, %126 in 1 : vector<8x32xf32>, vector<8x32xf32>, vector<8x32xf32>, vector<8x32xf32> -> vector<8x128xf32>
    %128 = arith.truncf %127 : vector<8x128xf32> to vector<8x128xbf16>
    %c0_34 = arith.constant 0 : index
    %c0_35 = arith.constant 0 : index
    %129 = vector.load %arg9[%c0_34, %c0_35] : memref<128x64xbf16, #tpu.memory_space<vmem>>, vector<128x64xbf16>
    %cst_36 = arith.constant dense<0.000000e+00> : vector<8x64xf32>
    %130 = tpu.matmul %128, %129, %cst_36 {dimension_numbers = #tpu.dot_dimension_numbers<[1], [0], [0], [1], [0, 0, 1, 1], [], []>} : vector<8x128xbf16>, vector<128x64xbf16>, vector<8x64xf32> -> vector<8x64xf32>
    %cst_37 = arith.constant 0.699999988 : f32
    %131 = vector.broadcast %cst_37 : f32 to vector<8x64xf32>
    %132 = arith.mulf %130, %131 : vector<8x64xf32>
    %133 = arith.addf %0, %132 : vector<8x64xf32>
    %c0_38 = arith.constant 0 : index
    %c0_39 = arith.constant 0 : index
    %134 = vector.load %arg10[%c0_38, %c0_39] : memref<1x64xf32, #tpu.memory_space<vmem>>, vector<1x64xf32>
    %135 = arith.mulf %133, %133 : vector<8x64xf32>
    %cst_40 = arith.constant dense<0.000000e+00> : vector<8xf32>
    %136 = vector.multi_reduction <add>, %135, %cst_40 [1] : vector<8x64xf32> to vector<8xf32>
    %137 = vector.shape_cast %136 : vector<8xf32> to vector<8x1xf32>
    %cst_41 = arith.constant 6.400000e+01 : f32
    %138 = vector.broadcast %cst_41 : f32 to vector<8x1xf32>
    %139 = arith.divf %137, %138 : vector<8x1xf32>
    %cst_42 = arith.constant 9.99999997E-7 : f32
    %140 = vector.broadcast %cst_42 : f32 to vector<8x1xf32>
    %141 = arith.addf %139, %140 : vector<8x1xf32>
    %142 = math.rsqrt %141 : vector<8x1xf32>
    %143 = vector.broadcast %142 : vector<8x1xf32> to vector<8x64xf32>
    %144 = arith.mulf %133, %143 : vector<8x64xf32>
    %145 = vector.broadcast %134 : vector<1x64xf32> to vector<8x64xf32>
    %146 = arith.mulf %144, %145 : vector<8x64xf32>
    %147 = arith.truncf %146 : vector<8x64xf32> to vector<8x64xbf16>
    %c0_43 = arith.constant 0 : index
    %c0_44 = arith.constant 0 : index
    %148 = vector.load %arg11[%c0_43, %c0_44] : memref<64x256xbf16, #tpu.memory_space<vmem>>, vector<64x256xbf16>
    %cst_45 = arith.constant dense<0.000000e+00> : vector<8x256xf32>
    %149 = tpu.matmul %147, %148, %cst_45 {dimension_numbers = #tpu.dot_dimension_numbers<[1], [0], [0], [1], [0, 0, 1, 1], [], []>} : vector<8x64xbf16>, vector<64x256xbf16>, vector<8x256xf32> -> vector<8x256xf32>
    %150 = vector.extract_strided_slice %149 {offsets = [0, 0], sizes = [8, 128], strides = [1, 1]} : vector<8x256xf32> to vector<8x128xf32>
    %151 = vector.extract_strided_slice %149 {offsets = [0, 128], sizes = [8, 128], strides = [1, 1]} : vector<8x256xf32> to vector<8x128xf32>
    %152 = arith.negf %150 : vector<8x128xf32>
    %153 = math.exp %152 : vector<8x128xf32>
    %cst_46 = arith.constant 1.000000e+00 : f32
    %154 = vector.broadcast %cst_46 : f32 to vector<8x128xf32>
    %155 = arith.addf %154, %153 : vector<8x128xf32>
    %156 = arith.divf %154, %155 : vector<8x128xf32>
    %157 = arith.mulf %150, %156 : vector<8x128xf32>
    %158 = arith.mulf %157, %151 : vector<8x128xf32>
    %159 = arith.truncf %158 : vector<8x128xf32> to vector<8x128xbf16>
    %c0_47 = arith.constant 0 : index
    %c0_48 = arith.constant 0 : index
    %160 = vector.load %arg12[%c0_47, %c0_48] : memref<128x64xbf16, #tpu.memory_space<vmem>>, vector<128x64xbf16>
    %cst_49 = arith.constant dense<0.000000e+00> : vector<8x64xf32>
    %161 = tpu.matmul %159, %160, %cst_49 {dimension_numbers = #tpu.dot_dimension_numbers<[1], [0], [0], [1], [0, 0, 1, 1], [], []>} : vector<8x128xbf16>, vector<128x64xbf16>, vector<8x64xf32> -> vector<8x64xf32>
    %cst_50 = arith.constant 0.699999988 : f32
    %162 = vector.broadcast %cst_50 : f32 to vector<8x64xf32>
    %163 = arith.mulf %161, %162 : vector<8x64xf32>
    %164 = arith.addf %133, %163 : vector<8x64xf32>
    %c0_51 = arith.constant 0 : index
    %c0_52 = arith.constant 0 : index
    %165 = vector.load %arg13[%c0_51, %c0_52] : memref<8x64xf32, #tpu.memory_space<vmem>>, vector<8x64xf32>
    tpu.vector_store %arg13[%c0_51, %c0_52], %164 {strides = array<i32>} : memref<8x64xf32, #tpu.memory_space<vmem>>, vector<8x64xf32>,
    return
  }
  func.func @transform_0(%arg0: i32) -> (i32, i32) {
    %c0_i32 = arith.constant 0 : i32
    %c0_i32_0 = arith.constant 0 : i32
    %c0_i32_1 = arith.constant 0 : i32
    return %c0_i32, %c0_i32_0 : i32, i32
  }
  func.func @transform_1(%arg0: i32) -> (i32, i32) {
    %c0_i32 = arith.constant 0 : i32
    %c0_i32_0 = arith.constant 0 : i32
    %c0_i32_1 = arith.constant 0 : i32
    return %c0_i32, %c0_i32_0 : i32, i32
  }
  func.func @transform_2(%arg0: i32) -> (i32, i32) {
    %c0_i32 = arith.constant 0 : i32
    %c0_i32_0 = arith.constant 0 : i32
    %c0_i32_1 = arith.constant 0 : i32
    return %c0_i32, %c0_i32_0 : i32, i32
  }
  func.func @transform_3(%arg0: i32) -> (i32, i32) {
    %c0_i32 = arith.constant 0 : i32
    %c0_i32_0 = arith.constant 0 : i32
    %c0_i32_1 = arith.constant 0 : i32
    return %c0_i32, %c0_i32_0 : i32, i32
  }
  func.func @transform_4(%arg0: i32) -> (i32, i32) {
    %c0_i32 = arith.constant 0 : i32
    %c0_i32_0 = arith.constant 0 : i32
    %c0_i32_1 = arith.constant 0 : i32
    return %c0_i32, %c0_i32_0 : i32, i32
  }
  func.func @transform_5(%arg0: i32) -> (i32, i32) {
    %c0_i32 = arith.constant 0 : i32
    %c0_i32_0 = arith.constant 0 : i32
    %c0_i32_1 = arith.constant 0 : i32
    return %c0_i32, %c0_i32_0 : i32, i32
  }
  func.func @transform_6(%arg0: i32) -> (i32, i32) {
    %c0_i32 = arith.constant 0 : i32
    %c0_i32_0 = arith.constant 0 : i32
    %c0_i32_1 = arith.constant 0 : i32
    return %c0_i32, %c0_i32_0 : i32, i32
  }
  func.func @transform_7(%arg0: i32) -> (i32, i32) {
    %c0_i32 = arith.constant 0 : i32
    %c0_i32_0 = arith.constant 0 : i32
    %c0_i32_1 = arith.constant 0 : i32
    return %c0_i32, %c0_i32_0 : i32, i32
  }
  func.func @transform_8(%arg0: i32) -> (i32, i32) {
    %c0_i32 = arith.constant 0 : i32
    %c0_i32_0 = arith.constant 0 : i32
    %c0_i32_1 = arith.constant 0 : i32
    return %c0_i32, %c0_i32_0 : i32, i32
  }
  func.func @transform_9(%arg0: i32) -> (i32, i32) {
    %c0_i32 = arith.constant 0 : i32
    %c0_i32_0 = arith.constant 0 : i32
    %c0_i32_1 = arith.constant 0 : i32
    return %c0_i32, %c0_i32_0 : i32, i32
  }
  func.func @transform_10(%arg0: i32) -> (i32, i32) {
    %c0_i32 = arith.constant 0 : i32
    %c0_i32_0 = arith.constant 0 : i32
    %c0_i32_1 = arith.constant 0 : i32
    return %c0_i32, %c0_i32_0 : i32, i32
  }
  func.func @transform_11(%arg0: i32) -> (i32, i32) {
    %c0_i32 = arith.constant 0 : i32
    %c0_i32_0 = arith.constant 0 : i32
    %c0_i32_1 = arith.constant 0 : i32
    return %c0_i32, %c0_i32_0 : i32, i32
  }
  func.func @transform_12(%arg0: i32) -> (i32, i32) {
    %c0_i32 = arith.constant 0 : i32
    %c0_i32_0 = arith.constant 0 : i32
    %c0_i32_1 = arith.constant 0 : i32
    return %c0_i32, %c0_i32_0 : i32, i32
  }
}

</mosaic_0001>

<llo_original>
// kernel: tpu_custom_call.1
$region0: #{tpu_custom_call.1}
  #allocation0 [shape = 'u32[]', space=smem, size = 0x4, offset = 0x4, fixed_abs, tag = 'smem constant byte address 0x4 - core index']
  #allocation1 [shape = 'u32[72,128]{1,0:T(1,128)}', space=vmem, size = 0x9000, scoped, tag = 'internal scratch']
  %s0 = inlined_call_operand.vmem [shape: f32[8,64], index: 0, kind: input, shape index: {}]
  %s1 = inlined_call_operand.vmem [shape: f32[32,4], index: 1, kind: input, shape index: {}]
  %s2 = inlined_call_operand.vmem [shape: f32[32,4], index: 2, kind: input, shape index: {}]
  %s3 = inlined_call_operand.vmem [shape: f32[1,64], index: 3, kind: input, shape index: {}]
  %s4 = inlined_call_operand.vmem [shape: bf16[64,72], index: 4, kind: input, shape index: {}]
  %s5 = inlined_call_operand.vmem [shape: f32[1,32], index: 5, kind: input, shape index: {}]
  %s6 = inlined_call_operand.vmem [shape: bf16[32,160], index: 6, kind: input, shape index: {}]
  %s7 = inlined_call_operand.vmem [shape: f32[1,32], index: 7, kind: input, shape index: {}]
  %s8 = inlined_call_operand.vmem [shape: bf16[128,64], index: 8, kind: input, shape index: {}]
  %s9 = inlined_call_operand.vmem [shape: f32[1,64], index: 9, kind: input, shape index: {}]
  %s10 = inlined_call_operand.vmem [shape: bf16[64,256], index: 10, kind: input, shape index: {}]
  %s11 = inlined_call_operand.vmem [shape: bf16[128,64], index: 11, kind: input, shape index: {}]
  %s12 = inlined_call_operand.hbm [shape: f32[8,64], index: 12, kind: output, shape index: {}]
  %s13 = sld [smem:[#allocation0]]
  $region58: #{tpu_custom_call.1} parent=0
    _
  %s15 = ssub.s32 1, %s13
  %s16 = scalar_select 0, %s15, %s13
  $region1: #{tpu_custom_call.1} parent=0
    #allocation2 [shape = 'u8[4096]{0}', space=vmem, size = 0x1000, scoped, tag = 'output window, operand 0, single buffered']
    #allocation3 [shape = 's32[1]{0}', space=sflag, size = 0x4, scoped, tag = 'scoped memory for tpu_custom_call.1']
    %17 = vsyncpa [#allocation3], 0
    // Predicated region
    $region2: #{tpu_custom_call.1} parent=1 // pred_check
      _
    $region3: #{tpu_custom_call.1} parent=1 // pred_check_branch
      %19 = sbr.rel (0) target = $region5
    $region4: #{tpu_custom_call.1} parent=1 // pred_region
      _
    $region5: #{tpu_custom_call.1} parent=1 // pred_fallthru
      _
    // Predicated region
    $region6: #{tpu_custom_call.1} parent=1 // pred_check
      _
    $region7: #{tpu_custom_call.1} parent=1 // pred_check_branch
      %21 = sbr.rel (0) target = $region9
    $region8: #{tpu_custom_call.1} parent=1 // pred_region
      _
    $region9: #{tpu_custom_call.1} parent=1 // pred_fallthru
      _
    // Predicated region
    $region10: #{tpu_custom_call.1} parent=1 // pred_check
      _
    $region11: #{tpu_custom_call.1} parent=1 // pred_check_branch
      %23 = sbr.rel (0) target = $region13
    $region12: #{tpu_custom_call.1} parent=1 // pred_region
      _
    $region13: #{tpu_custom_call.1} parent=1 // pred_fallthru
      _
    // Predicated region
    $region14: #{tpu_custom_call.1} parent=1 // pred_check
      _
    $region15: #{tpu_custom_call.1} parent=1 // pred_check_branch
      %25 = sbr.rel (0) target = $region17
    $region16: #{tpu_custom_call.1} parent=1 // pred_region
      _
    $region17: #{tpu_custom_call.1} parent=1 // pred_fallthru
      _
    // Predicated region
    $region18: #{tpu_custom_call.1} parent=1 // pred_check
      _
    $region19: #{tpu_custom_call.1} parent=1 // pred_check_branch
      %27 = sbr.rel (0) target = $region21
    $region20: #{tpu_custom_call.1} parent=1 // pred_region
      _
    $region21: #{tpu_custom_call.1} parent=1 // pred_fallthru
      _
    // Predicated region
    $region22: #{tpu_custom_call.1} parent=1 // pred_check
      _
    $region23: #{tpu_custom_call.1} parent=1 // pred_check_branch
      %29 = sbr.rel (0) target = $region25
    $region24: #{tpu_custom_call.1} parent=1 // pred_region
      _
    $region25: #{tpu_custom_call.1} parent=1 // pred_fallthru
      _
    // Predicated region
    $region26: #{tpu_custom_call.1} parent=1 // pred_check
      _
    $region27: #{tpu_custom_call.1} parent=1 // pred_check_branch
      %31 = sbr.rel (0) target = $region29
    $region28: #{tpu_custom_call.1} parent=1 // pred_region
      _
    $region29: #{tpu_custom_call.1} parent=1 // pred_fallthru
      _
    // Predicated region
    $region30: #{tpu_custom_call.1} parent=1 // pred_check
      _
    $region31: #{tpu_custom_call.1} parent=1 // pred_check_branch
      %33 = sbr.rel (0) target = $region33
    $region32: #{tpu_custom_call.1} parent=1 // pred_region
      _
    $region33: #{tpu_custom_call.1} parent=1 // pred_fallthru
      _
    // Predicated region
    $region34: #{tpu_custom_call.1} parent=1 // pred_check
      _
    $region35: #{tpu_custom_call.1} parent=1 // pred_check_branch
      %35 = sbr.rel (0) target = $region37
    $region36: #{tpu_custom_call.1} parent=1 // pred_region
      _
    $region37: #{tpu_custom_call.1} parent=1 // pred_fallthru
      _
    // Predicated region
    $region38: #{tpu_custom_call.1} parent=1 // pred_check
      _
    $region39: #{tpu_custom_call.1} parent=1 // pred_check_branch
      %37 = sbr.rel (0) target = $region41
    $region40: #{tpu_custom_call.1} parent=1 // pred_region
      _
    $region41: #{tpu_custom_call.1} parent=1 // pred_fallthru
      _
    // Predicated region
    $region42: #{tpu_custom_call.1} parent=1 // pred_check
      _
    $region43: #{tpu_custom_call.1} parent=1 // pred_check_branch
      %39 = sbr.rel (0) target = $region45
    $region44: #{tpu_custom_call.1} parent=1 // pred_region
      _
    $region45: #{tpu_custom_call.1} parent=1 // pred_fallthru
      _
    // Predicated region
    $region46: #{tpu_custom_call.1} parent=1 // pred_check
      _
    $region47: #{tpu_custom_call.1} parent=1 // pred_check_branch
      %41 = sbr.rel (0) target = $region49
    $region48: #{tpu_custom_call.1} parent=1 // pred_region
      _
    $region49: #{tpu_custom_call.1} parent=1 // pred_fallthru
      _
    %v43 = vld [vmem:[%s0] sm:$0xff]
    %v44 = vld [vmem:[%s1] sm:$0xff]
    %v45 = vld [vmem:[%s1 + $0x8] sm:$0xff]
    %v46 = vld [vmem:[%s1 + $0x10] sm:$0xff]
    %v47 = vld [vmem:[%s1 + $0x18] sm:$0xff]
    %v48 = vld [vmem:[%s2] sm:$0xff]
    %v49 = vld [vmem:[%s2 + $0x8] sm:$0xff]
    %v50 = vld [vmem:[%s2 + $0x10] sm:$0xff]
    %v51 = vld [vmem:[%s2 + $0x18] sm:$0xff]
    %v52 = vld [vmem:[%s3] sm:$0x1]
    %v53 = vmul.f32 %v43, %v43
    %vm54 = vcmask 523264
    %v55 = vsel %vm54, %v53, 0.0
    %56 = vadd.xlane.f32.xlu0 %v55
    %v57 = vpop.xlane.xlu0 %56
    %v58 = vrcp.pop 64.0
    %v59 = vmul.f32 64.0, %v58
    %v60 = vsub.f32 1.0, %v59
    %v61 = vmul.f32 %v58, %v60
    %v62 = vadd.f32 %v58, %v61
    %vm63 = vweird.f32 %v58
    %v64 = vsel %vm63, %v58, %v62
    %v65 = vmul.f32 %v57, %v64
    %v66 = vadd.f32 %v65, 1e-06
    %v67 = vrsqrt.pop %v66
    %v68 = vmul.f32 %v67, %v66
    %v69 = vmul.f32 %v68, %v67
    %v70 = vmul.f32 0.5, %v69
    %v71 = vsub.f32 1.5, %v70
    %v72 = vmul.f32 %v67, %v71
    %vm73 = vweird.f32 %v66
    %vm74 = vweird.f32 %v67
    %vm75 = vmor %vm73, %vm74
    %v76 = vsel %vm75, %v67, %v72
    %v77 = vmul.f32 %v43, %v76
    %v79 = vperm.slane %v52, 0
    %v81 = vmul.f32 %v77, %v79
    %v82 = vpack.c.bf16 %v81, %v81
    %v83 = vld [vmem:[%s4] sm:$0xf]
    %v84 = vld [vmem:[%s4 + $0x4] sm:$0xf]
    %v85 = vld [vmem:[%s4 + $0x8] sm:$0xf]
    %v86 = vld [vmem:[%s4 + $0xc] sm:$0xf]
    %v87 = vld [vmem:[%s4 + $0x10] sm:$0xf]
    %v88 = vld [vmem:[%s4 + $0x14] sm:$0xf]
    %v89 = vld [vmem:[%s4 + $0x18] sm:$0xf]
    %v90 = vld [vmem:[%s4 + $0x1c] sm:$0xf]
    %v99 = vunpack.c.l.b16 %v83
    %v100 = vunpack.c.l.b16 %v84
    %v101 = vunpack.c.l.b16 %v85
    %v102 = vunpack.c.l.b16 %v86
    %v103 = vunpack.c.l.b16 %v87
    %v104 = vunpack.c.l.b16 %v88
    %v105 = vunpack.c.l.b16 %v89
    %v106 = vunpack.c.l.b16 %v90
    %v107 = vpack.c.b16 %v100, %v99
    %v108 = vpack.c.b16 %v102, %v101
    %v109 = vpack.c.b16 %v104, %v103
    %v110 = vpack.c.b16 %v106, %v105
    %v116 = vsel %vm54, %v82, 0
    %118 = vmatpush.bf16.msra.mxu0 0
    %119 = vmatpush.bf16.msra.mxu0 0
    %120 = vmatpush.bf16.msra.mxu0 0
    %121 = vmatpush.bf16.msra.mxu0 0
    %122 = vmatpush.bf16.msra.mxu0 %v110
    %123 = vmatpush.bf16.msra.mxu0 %v109
    %124 = vmatpush.bf16.msra.mxu0 %v108
    %125 = vmatpush.bf16.msra.mxu0 %v107
    %126 = vmatmul.bf16.gmra.mxu0 %v116
    %v127 = vpop.f32.mrf.mxu0
    %v128 = vadd.f32 0.0, %v127
    %v129 = vpop.f32.mrf.mxu0
    %130 = vdwg.mxu0
    %v131 = vld [vmem:[%s5] sm:$0x1]
    %v132 = vmul.f32 %v128, %v128
    %vm133 = vcmask 261120
    %v134 = vsel %vm133, %v132, 0.0
    %135 = vadd.xlane.f32.xlu0 %v134
    %v136 = vpop.xlane.xlu0 %135
    %v137 = vrcp.pop 32.0
    %v138 = vmul.f32 32.0, %v137
    %v139 = vsub.f32 1.0, %v138
    %v140 = vmul.f32 %v137, %v139
    %v141 = vadd.f32 %v137, %v140
    %vm142 = vweird.f32 %v137
    %v143 = vsel %vm142, %v137, %v141
    %v144 = vmul.f32 %v136, %v143
    %v145 = vadd.f32 %v144, 1e-06
    %v146 = vrsqrt.pop %v145
    %v147 = vmul.f32 %v146, %v145
    %v148 = vmul.f32 %v147, %v146
    %v149 = vmul.f32 0.5, %v148
    %v150 = vsub.f32 1.5, %v149
    %v151 = vmul.f32 %v146, %v150
    %vm152 = vweird.f32 %v145
    %vm153 = vweird.f32 %v146
    %vm154 = vmor %vm152, %vm153
    %v155 = vsel %vm154, %v146, %v151
    %v156 = vmul.f32 %v128, %v155
    %v158 = vperm.slane %v131, 0
    %v160 = vmul.f32 %v156, %v158
    %v161 = vld [vmem:[%s7] sm:$0x1]
    %163 = vrot.lane.b32.xlu0 %v132, 96
    %v164 = vpop.permute.xlu0 %163
    %v166 = vsel %vm133, %v164, 0.0
    %167 = vadd.xlane.f32.xlu0 %v166
    %v168 = vpop.xlane.xlu0 %167
    %v169 = vmul.f32 %v168, %v143
    %v170 = vadd.f32 %v169, 1e-06
    %v171 = vrsqrt.pop %v170
    %v172 = vmul.f32 %v171, %v170
    %v173 = vmul.f32 %v172, %v171
    %v174 = vmul.f32 0.5, %v173
    %v175 = vsub.f32 1.5, %v174
    %v176 = vmul.f32 %v171, %v175
    %vm177 = vweird.f32 %v170
    %vm178 = vweird.f32 %v171
    %vm179 = vmor %vm177, %vm178
    %v180 = vsel %vm179, %v171, %v176
    %v181 = vmul.f32 %v128, %v180
    %v183 = vperm.slane %v161, 0
    %184 = vrot.lane.b32.xlu0 %v183, 32
    %v185 = vpop.permute.xlu0 %184
    %v187 = vmul.f32 %v181, %v185
    %189 = vrot.lane.b32.xlu0 %v44, 64
    %v190 = vpop.permute.xlu0 %189
    %v192 = vmul.f32 %v128, %v190
    %194 = vrot.lane.b32.xlu0 %v48, 68
    %v195 = vpop.permute.xlu0 %194
    %v197 = vmul.f32 %v128, %v195
    %199 = vrot.lane.b32.xlu0 %v197, 124
    %v200 = vpop.permute.xlu0 %199
    %v202 = vsub.f32 %v192, %v200
    %203 = vrot.lane.b32.xlu0 %v44, 68
    %v204 = vpop.permute.xlu0 %203
    %v206 = vmul.f32 %v128, %v204
    %207 = vrot.lane.b32.xlu0 %v48, 64
    %v208 = vpop.permute.xlu0 %207
    %v210 = vmul.f32 %v128, %v208
    %212 = vrot.lane.b32.xlu0 %v210, 4
    %v213 = vpop.permute.xlu0 %212
    %v215 = vadd.f32 %v206, %v213
    %217 = vrot.lane.b32.xlu0 %v202, 64
    %v218 = vpop.permute.xlu0 %217
    %221 = vrot.lane.b32.xlu0 %v215, 64
    %v222 = vpop.permute.xlu0 %221
    %vm224 = vcmask 31744
    %v225 = vsel %vm224, %v218, %v222
    %v226 = vpack.c.bf16 %v160, %v160
    %v227 = vld [vmem:[%s6] sm:$0xff]
    %v228 = vld [vmem:[%s6 + $0x8] sm:$0xff]
    %v229 = vld [vmem:[%s6 + $0x10] sm:$0xff]
    %v230 = vld [vmem:[%s6 + $0x18] sm:$0xff]
    %v235 = vunpack.c.l.b16 %v227
    %v236 = vunpack.c.h.b16 %v227
    %v237 = vunpack.c.l.b16 %v228
    %v238 = vunpack.c.h.b16 %v228
    %v239 = vunpack.c.l.b16 %v229
    %v240 = vunpack.c.h.b16 %v229
    %v241 = vunpack.c.l.b16 %v230
    %v242 = vunpack.c.h.b16 %v230
    %v243 = vpack.c.b16 %v237, %v235
    %v244 = vpack.c.b16 %v238, %v236
    %v245 = vpack.c.b16 %v241, %v239
    %v246 = vpack.c.b16 %v242, %v240
    %v252 = vsel %vm133, %v226, 0
    %254 = vmatpush.bf16.msra.mxu0 0
    %255 = vmatpush.bf16.msra.mxu0 0
    %256 = vmatpush.bf16.msra.mxu0 0
    %257 = vmatpush.bf16.msra.mxu0 0
    %258 = vmatpush.bf16.msra.mxu0 0
    %259 = vmatpush.bf16.msra.mxu0 0
    %260 = vmatpush.bf16.msra.mxu0 %v245
    %261 = vmatpush.bf16.msra.mxu0 %v243
    %262 = vmatmul.bf16.gmra.mxu0 %v252
    %v263 = vpop.f32.mrf.mxu0
    %v264 = vadd.f32 0.0, %v263
    %v265 = vpop.f32.mrf.mxu0
    %266 = vdwg.mxu0
    %267 = vmatpush.bf16.msra.mxu0 0
    %268 = vmatpush.bf16.msra.mxu0 0
    %269 = vmatpush.bf16.msra.mxu0 0
    %270 = vmatpush.bf16.msra.mxu0 0
    %271 = vmatpush.bf16.msra.mxu0 0
    %272 = vmatpush.bf16.msra.mxu0 0
    %273 = vmatpush.bf16.msra.mxu0 %v246
    %274 = vmatpush.bf16.msra.mxu0 %v244
    %275 = vmatmul.bf16.gmra.mxu0 %v252
    %v276 = vpop.f32.mrf.mxu0
    %v277 = vadd.f32 0.0, %v276
    %v278 = vpop.f32.mrf.mxu0
    %279 = vdwg.mxu0
    %281 = vrot.lane.b32.xlu0 %v264, 96
    %v282 = vpop.permute.xlu0 %281
    %284 = vrot.lane.b32.xlu0 %v264, 64
    %v285 = vpop.permute.xlu0 %284
    %287 = vrot.lane.b32.xlu0 %v264, 32
    %v288 = vpop.permute.xlu0 %287
    %291 = vrot.lane.b32.xlu0 %v277, 120
    %v292 = vpop.permute.xlu0 %291
    %294 = vrot.lane.b32.xlu0 %v277, 112
    %v295 = vpop.permute.xlu0 %294
    %297 = vrot.lane.b32.xlu0 %v277, 104
    %v298 = vpop.permute.xlu0 %297
    %v300 = vmul.f32 %v277, %v44
    %v301 = vmul.f32 %v292, %v45
    %v302 = vmul.f32 %v295, %v46
    %v303 = vmul.f32 %v298, %v47
    %307 = vrot.lane.b32.xlu0 %v48, 4
    %v308 = vpop.permute.xlu0 %307
    %309 = vrot.lane.b32.xlu0 %v49, 4
    %v310 = vpop.permute.xlu0 %309
    %311 = vrot.lane.b32.xlu0 %v50, 4
    %v312 = vpop.permute.xlu0 %311
    %313 = vrot.lane.b32.xlu0 %v51, 4
    %v314 = vpop.permute.xlu0 %313
    %v319 = vmul.f32 %v277, %v308
    %v320 = vmul.f32 %v292, %v310
    %v321 = vmul.f32 %v295, %v312
    %v322 = vmul.f32 %v298, %v314
    %327 = vrot.lane.b32.xlu0 %v319, 124
    %v328 = vpop.permute.xlu0 %327
    %329 = vrot.lane.b32.xlu0 %v320, 124
    %v330 = vpop.permute.xlu0 %329
    %331 = vrot.lane.b32.xlu0 %v321, 124
    %v332 = vpop.permute.xlu0 %331
    %333 = vrot.lane.b32.xlu0 %v322, 124
    %v334 = vpop.permute.xlu0 %333
    %v339 = vsub.f32 %v300, %v328
    %v340 = vsub.f32 %v301, %v330
    %v341 = vsub.f32 %v302, %v332
    %v342 = vsub.f32 %v303, %v334
    %346 = vrot.lane.b32.xlu0 %v44, 4
    %v347 = vpop.permute.xlu0 %346
    %348 = vrot.lane.b32.xlu0 %v45, 4
    %v349 = vpop.permute.xlu0 %348
    %350 = vrot.lane.b32.xlu0 %v46, 4
    %v351 = vpop.permute.xlu0 %350
    %352 = vrot.lane.b32.xlu0 %v47, 4
    %v353 = vpop.permute.xlu0 %352
    %v358 = vmul.f32 %v277, %v347
    %v359 = vmul.f32 %v292, %v349
    %v360 = vmul.f32 %v295, %v351
    %v361 = vmul.f32 %v298, %v353
    %v362 = vmul.f32 %v277, %v48
    %v363 = vmul.f32 %v292, %v49
    %v364 = vmul.f32 %v295, %v50
    %v365 = vmul.f32 %v298, %v51
    %370 = vrot.lane.b32.xlu0 %v362, 4
    %v371 = vpop.permute.xlu0 %370
    %372 = vrot.lane.b32.xlu0 %v363, 4
    %v373 = vpop.permute.xlu0 %372
    %374 = vrot.lane.b32.xlu0 %v364, 4
    %v375 = vpop.permute.xlu0 %374
    %376 = vrot.lane.b32.xlu0 %v365, 4
    %v377 = vpop.permute.xlu0 %376
    %v382 = vadd.f32 %v358, %v371
    %v383 = vadd.f32 %v359, %v373
    %v384 = vadd.f32 %v360, %v375
    %v385 = vadd.f32 %v361, %v377
    %v386 = vsel %vm224, %v339, %v382
    %v387 = vsel %vm224, %v340, %v383
    %v388 = vsel %vm224, %v341, %v384
    %v389 = vsel %vm224, %v342, %v385
    %v390 = vpack.c.bf16 %v187, %v187
    %v391 = vpack.c.bf16 %v282, %v264
    %v392 = vpack.c.bf16 %v288, %v285
    %v393 = vpack.c.bf16 %v387, %v386
    %v394 = vpack.c.bf16 %v389, %v388
    %v395 = vpack.c.bf16 %v225, %v225
    %vm396 = vcmask 64512
    %v398 = vsel %vm396, %v393, 0
    %v401 = vsel %vm396, %v394, 0
    %v404 = vsel %vm396, %v395, 0
    %406 = vmatpush.bf16.xpose.msra.mxu0 0
    %407 = vmatpush.bf16.xpose.msra.mxu0 0
    %408 = vmatpush.bf16.xpose.msra.mxu0 0
    %409 = vmatpush.bf16.xpose.msra.mxu0 0
    %410 = vmatpush.bf16.xpose.msra.mxu0 0
    %411 = vmatpush.bf16.xpose.msra.mxu0 0
    %412 = vmatpush.bf16.xpose.msra.mxu0 0
    %413 = vmatpush.bf16.xpose.msra.mxu0 %v404
    %414 = vmatmul.bf16.gmra.mxu0 %v398
    %v415 = vpop.f32.mrf.mxu0
    %v416 = vadd.f32 0.0, %v415
    %v417 = vpop.f32.mrf.mxu0
    %v418 = vadd.f32 0.0, %v417
    %419 = vmatmul.bf16.gmra.mxu0 %v401
    %v420 = vpop.f32.mrf.mxu0
    %v421 = vadd.f32 0.0, %v420
    %v422 = vpop.f32.mrf.mxu0
    %v423 = vadd.f32 0.0, %v422
    %424 = vdwg.mxu0
    %426 = vrot.lane.b32.xlu0 %v390, 96
    %v427 = vpop.permute.xlu0 %426
    %v429 = vsel %vm133, %v391, 0
    %v432 = vsel %vm133, %v392, 0
    %v435 = vsel %vm133, %v427, 0
    %437 = vmatpush.bf16.xpose.msra.mxu0 0
    %438 = vmatpush.bf16.xpose.msra.mxu0 0
    %439 = vmatpush.bf16.xpose.msra.mxu0 0
    %440 = vmatpush.bf16.xpose.msra.mxu0 0
    %441 = vmatpush.bf16.xpose.msra.mxu0 0
    %442 = vmatpush.bf16.xpose.msra.mxu0 0
    %443 = vmatpush.bf16.xpose.msra.mxu0 0
    %444 = vmatpush.bf16.xpose.msra.mxu0 %v435
    %445 = vmatmul.bf16.gmra.mxu0 %v429
    %v446 = vpop.f32.mrf.mxu0
    %v447 = vadd.f32 %v416, %v446
    %v448 = vpop.f32.mrf.mxu0
    %v449 = vadd.f32 %v418, %v448
    %450 = vmatmul.bf16.gmra.mxu0 %v432
    %v451 = vpop.f32.mrf.mxu0
    %v452 = vadd.f32 %v421, %v451
    %v453 = vpop.f32.mrf.mxu0
    %v454 = vadd.f32 %v423, %v453
    %455 = vdwg.mxu0
    %v456 = vlaneseq
    %v457 = vshrl.u32 %v456, 7
    %v458 = vadd.s32 %v457, 8
    %v459 = vadd.s32 %v457, 16
    %v460 = vadd.s32 %v457, 24
    %v461 = vlaneseq
    %v462 = vand.u32 %v461, 127
    %vm463 = vcmp.lt.s32.totalorder %v457, 0
    %v464 = vsub.s32 0, %v457
    %v465 = vsel %vm463, %v464, %v457
    %v466 = vshrl.u32 %v465, 3
    %v467 = vand.u32 %v465, 7
    %v468 = vsub.s32 0, %v467
    %v469 = vsel %vm463, %v468, %v467
    %vm470 = vcmp.lt.s32.totalorder %v458, 0
    %v471 = vsub.s32 0, %v458
    %v472 = vsel %vm470, %v471, %v458
    %v473 = vshrl.u32 %v472, 3
    %v474 = vand.u32 %v472, 7
    %v475 = vsub.s32 0, %v474
    %v476 = vsel %vm470, %v475, %v474
    %vm477 = vcmp.lt.s32.totalorder %v459, 0
    %v478 = vsub.s32 0, %v459
    %v479 = vsel %vm477, %v478, %v459
    %v480 = vshrl.u32 %v479, 3
    %v481 = vand.u32 %v479, 7
    %v482 = vsub.s32 0, %v481
    %v483 = vsel %vm477, %v482, %v481
    %vm484 = vcmp.lt.s32.totalorder %v460, 0
    %v485 = vsub.s32 0, %v460
    %v486 = vsel %vm484, %v485, %v460
    %v487 = vshrl.u32 %v486, 3
    %v488 = vand.u32 %v486, 7
    %v489 = vsub.s32 0, %v488
    %v490 = vsel %vm484, %v489, %v488
    %vm491 = vcmp.ne.s32.totalorder %v469, 0
    %vm492 = vcmp.ne.s32.totalorder %v476, 0
    %vm493 = vcmp.ne.s32.totalorder %v483, 0
    %vm494 = vcmp.ne.s32.totalorder %v490, 0
    %vm495 = vcmp.lt.s32.totalorder %v469, 0
    %vm496 = vcmp.lt.s32.totalorder %v476, 0
    %vm497 = vcmp.lt.s32.totalorder %v483, 0
    %vm498 = vcmp.lt.s32.totalorder %v490, 0
    %vm499 = vmand %vm495, %vm491
    %vm500 = vmand %vm496, %vm492
    %vm501 = vmand %vm497, %vm493
    %vm502 = vmand %vm498, %vm494
    %v503 = vadd.s32 %v469, 8
    %v504 = vadd.s32 %v476, 8
    %v505 = vadd.s32 %v483, 8
    %v506 = vadd.s32 %v490, 8
    %v507 = vsel %vm499, %v503, %v469
    %v508 = vsel %vm500, %v504, %v476
    %v509 = vsel %vm501, %v505, %v483
    %v510 = vsel %vm502, %v506, %v490
    %vm511 = vcmp.le.s32.totalorder %v462, %v507
    %vm512 = vcmp.le.s32.totalorder %v462, %v508
    %vm513 = vcmp.le.s32.totalorder %v462, %v509
    %vm514 = vcmp.le.s32.totalorder %v462, %v510
    %v515 = vsel %vm511, %v447, -1e+30
    %v516 = vsel %vm512, %v449, -1e+30
    %v517 = vsel %vm513, %v452, -1e+30
    %v518 = vsel %vm514, %v454, -1e+30
    %v519 = vsel %vm396, %v515, -inf
    %520 = vmax.xlane.f32.xlu0 %v519
    %v521 = vpop.xlane.xlu0 %520
    %v522 = vsel %vm396, %v516, -inf
    %523 = vmax.xlane.f32.xlu0 %v522
    %v524 = vpop.xlane.xlu0 %523
    %v525 = vsel %vm396, %v517, -inf
    %526 = vmax.xlane.f32.xlu0 %v525
    %v527 = vpop.xlane.xlu0 %526
    %v528 = vsel %vm396, %v518, -inf
    %529 = vmax.xlane.f32.xlu0 %v528
    %v530 = vpop.xlane.xlu0 %529
    %v531 = vsub.f32 %v515, %v521
    %v532 = vsub.f32 %v516, %v524
    %v533 = vsub.f32 %v517, %v527
    %v534 = vsub.f32 %v518, %v530
    %v535 = vmul.f32 %v531, 1.442695
    %v536 = vpow.pop %v535
    %v537 = vmul.f32 %v532, 1.442695
    %v538 = vpow.pop %v537
    %v539 = vmul.f32 %v533, 1.442695
    %v540 = vpow.pop %v539
    %v541 = vmul.f32 %v534, 1.442695
    %v542 = vpow.pop %v541
    %v543 = vsel %vm396, %v536, 0.0
    %544 = vadd.xlane.f32.xlu0 %v543
    %v545 = vpop.xlane.xlu0 %544
    %v546 = vsel %vm396, %v538, 0.0
    %547 = vadd.xlane.f32.xlu0 %v546
    %v548 = vpop.xlane.xlu0 %547
    %v549 = vsel %vm396, %v540, 0.0
    %550 = vadd.xlane.f32.xlu0 %v549
    %v551 = vpop.xlane.xlu0 %550
    %v552 = vsel %vm396, %v542, 0.0
    %553 = vadd.xlane.f32.xlu0 %v552
    %v554 = vpop.xlane.xlu0 %553
    %v555 = vrcp.pop %v545
    %v556 = vrcp.pop %v548
    %v557 = vrcp.pop %v551
    %v558 = vrcp.pop %v554
    %v559 = vmul.f32 %v536, %v555
    %v560 = vmul.f32 %v538, %v556
    %v561 = vmul.f32 %v540, %v557
    %v562 = vmul.f32 %v542, %v558
    %v563 = vpack.c.bf16 %v560, %v559
    %v564 = vpack.c.bf16 %v562, %v561
    %v566 = vsel %vm396, %v563, 0
    %v569 = vsel %vm396, %v564, 0
    %vm571 = vcmask 1043456
    %v572 = vsel %vm571, %v427, 0
    %574 = vmatpush.bf16.msra.mxu0 0
    %575 = vmatpush.bf16.msra.mxu0 0
    %576 = vmatpush.bf16.msra.mxu0 0
    %577 = vmatpush.bf16.msra.mxu0 0
    %578 = vmatpush.bf16.msra.mxu0 0
    %579 = vmatpush.bf16.msra.mxu0 0
    %580 = vmatpush.bf16.msra.mxu0 0
    %581 = vmatpush.bf16.msra.mxu0 %v572
    %582 = vmatmul.bf16.gmra.mxu0 %v566
    %v583 = vpop.f32.mrf.mxu0
    %v584 = vadd.f32 0.0, %v583
    %v585 = vpop.f32.mrf.mxu0
    %v586 = vadd.f32 0.0, %v585
    %587 = vmatmul.bf16.gmra.mxu0 %v569
    %v588 = vpop.f32.mrf.mxu0
    %v589 = vadd.f32 0.0, %v588
    %v590 = vpop.f32.mrf.mxu0
    %v591 = vadd.f32 0.0, %v590
    %592 = vdwg.mxu0
    %594 = vrot.lane.b32.xlu0 %v586, 32
    %v595 = vpop.permute.xlu0 %594
    %598 = vrot.lane.b32.xlu0 %v589, 64
    %v599 = vpop.permute.xlu0 %598
    %602 = vrot.lane.b32.xlu0 %v591, 96
    %v603 = vpop.permute.xlu0 %602
    %v605 = vsel %vm133, %v584, %v595
    %v606 = vsel %vm54, %v605, %v599
    %vm607 = vcmask 785408
    %v608 = vsel %vm607, %v606, %v603
    %v609 = vpack.c.bf16 %v608, %v608
    %v610 = vld [vmem:[%s8] sm:$0xf]
    %v611 = vld [vmem:[%s8 + $0x4] sm:$0xf]
    %v612 = vld [vmem:[%s8 + $0x8] sm:$0xf]
    %v613 = vld [vmem:[%s8 + $0xc] sm:$0xf]
    %v614 = vld [vmem:[%s8 + $0x10] sm:$0xf]
    %v615 = vld [vmem:[%s8 + $0x14] sm:$0xf]
    %v616 = vld [vmem:[%s8 + $0x18] sm:$0xf]
    %v617 = vld [vmem:[%s8 + $0x1c] sm:$0xf]
    %v618 = vld [vmem:[%s8 + $0x20] sm:$0xf]
    %v619 = vld [vmem:[%s8 + $0x24] sm:$0xf]
    %v620 = vld [vmem:[%s8 + $0x28] sm:$0xf]
    %v621 = vld [vmem:[%s8 + $0x2c] sm:$0xf]
    %v622 = vld [vmem:[%s8 + $0x30] sm:$0xf]
    %v623 = vld [vmem:[%s8 + $0x34] sm:$0xf]
    %v624 = vld [vmem:[%s8 + $0x38] sm:$0xf]
    %v625 = vld [vmem:[%s8 + $0x3c] sm:$0xf]
    %v642 = vunpack.c.l.b16 %v610
    %v643 = vunpack.c.l.b16 %v611
    %v644 = vunpack.c.l.b16 %v612
    %v645 = vunpack.c.l.b16 %v613
    %v646 = vunpack.c.l.b16 %v614
    %v647 = vunpack.c.l.b16 %v615
    %v648 = vunpack.c.l.b16 %v616
    %v649 = vunpack.c.l.b16 %v617
    %v650 = vunpack.c.l.b16 %v618
    %v651 = vunpack.c.l.b16 %v619
    %v652 = vunpack.c.l.b16 %v620
    %v653 = vunpack.c.l.b16 %v621
    %v654 = vunpack.c.l.b16 %v622
    %v655 = vunpack.c.l.b16 %v623
    %v656 = vunpack.c.l.b16 %v624
    %v657 = vunpack.c.l.b16 %v625
    %v658 = vpack.c.b16 %v643, %v642
    %v659 = vpack.c.b16 %v645, %v644
    %v660 = vpack.c.b16 %v647, %v646
    %v661 = vpack.c.b16 %v649, %v648
    %v662 = vpack.c.b16 %v651, %v650
    %v663 = vpack.c.b16 %v653, %v652
    %v664 = vpack.c.b16 %v655, %v654
    %v665 = vpack.c.b16 %v657, %v656
    %674 = vmatpush.bf16.msra.mxu0 %v665
    %675 = vmatpush.bf16.msra.mxu0 %v664
    %676 = vmatpush.bf16.msra.mxu0 %v663
    %677 = vmatpush.bf16.msra.mxu0 %v662
    %678 = vmatpush.bf16.msra.mxu0 %v661
    %679 = vmatpush.bf16.msra.mxu0 %v660
    %680 = vmatpush.bf16.msra.mxu0 %v659
    %681 = vmatpush.bf16.msra.mxu0 %v658
    %682 = vmatmul.bf16.gmra.mxu0 %v609
    %v683 = vpop.f32.mrf.mxu0
    %v684 = vadd.f32 0.0, %v683
    %v685 = vpop.f32.mrf.mxu0
    %686 = vdwg.mxu0
    %v687 = vmul.f32 %v684, 0.7
    %v688 = vadd.f32 %v43, %v687
    %v689 = vld [vmem:[%s9] sm:$0x1]
    %v690 = vmul.f32 %v688, %v688
    %v691 = vsel %vm54, %v690, 0.0
    %692 = vadd.xlane.f32.xlu0 %v691
    %v693 = vpop.xlane.xlu0 %692
    %v694 = vmul.f32 %v693, %v64
    %v695 = vadd.f32 %v694, 1e-06
    %v696 = vrsqrt.pop %v695
    %v697 = vmul.f32 %v696, %v695
    %v698 = vmul.f32 %v697, %v696
    %v699 = vmul.f32 0.5, %v698
    %v700 = vsub.f32 1.5, %v699
    %v701 = vmul.f32 %v696, %v700
    %vm702 = vweird.f32 %v695
    %vm703 = vweird.f32 %v696
    %vm704 = vmor %vm702, %vm703
    %v705 = vsel %vm704, %v696, %v701
    %v706 = vmul.f32 %v688, %v705
    %v708 = vperm.slane %v689, 0
    %v710 = vmul.f32 %v706, %v708
    %v711 = vpack.c.bf16 %v710, %v710
    %v712 = vld [vmem:[%s10] sm:$0xff]
    %v713 = vld [vmem:[%s10 + $0x8] sm:$0xff]
    %v714 = vld [vmem:[%s10 + $0x10] sm:$0xff]
    %v715 = vld [vmem:[%s10 + $0x18] sm:$0xff]
    %v716 = vld [vmem:[%s10 + $0x20] sm:$0xff]
    %v717 = vld [vmem:[%s10 + $0x28] sm:$0xff]
    %v718 = vld [vmem:[%s10 + $0x30] sm:$0xff]
    %v719 = vld [vmem:[%s10 + $0x38] sm:$0xff]
    %v728 = vunpack.c.l.b16 %v712
    %v729 = vunpack.c.h.b16 %v712
    %v730 = vunpack.c.l.b16 %v713
    %v731 = vunpack.c.h.b16 %v713
    %v732 = vunpack.c.l.b16 %v714
    %v733 = vunpack.c.h.b16 %v714
    %v734 = vunpack.c.l.b16 %v715
    %v735 = vunpack.c.h.b16 %v715
    %v736 = vunpack.c.l.b16 %v716
    %v737 = vunpack.c.h.b16 %v716
    %v738 = vunpack.c.l.b16 %v717
    %v739 = vunpack.c.h.b16 %v717
    %v740 = vunpack.c.l.b16 %v718
    %v741 = vunpack.c.h.b16 %v718
    %v742 = vunpack.c.l.b16 %v719
    %v743 = vunpack.c.h.b16 %v719
    %v744 = vpack.c.b16 %v730, %v728
    %v745 = vpack.c.b16 %v731, %v729
    %v746 = vpack.c.b16 %v734, %v732
    %v747 = vpack.c.b16 %v735, %v733
    %v748 = vpack.c.b16 %v738, %v736
    %v749 = vpack.c.b16 %v739, %v737
    %v750 = vpack.c.b16 %v742, %v740
    %v751 = vpack.c.b16 %v743, %v741
    %v761 = vsel %vm54, %v711, 0
    %763 = vmatpush.bf16.msra.mxu0 0
    %764 = vmatpush.bf16.msra.mxu0 0
    %765 = vmatpush.bf16.msra.mxu0 0
    %766 = vmatpush.bf16.msra.mxu0 0
    %767 = vmatpush.bf16.msra.mxu0 %v750
    %768 = vmatpush.bf16.msra.mxu0 %v748
    %769 = vmatpush.bf16.msra.mxu0 %v746
    %770 = vmatpush.bf16.msra.mxu0 %v744
    %771 = vmatmul.bf16.gmra.mxu0 %v761
    %v772 = vpop.f32.mrf.mxu0
    %v773 = vadd.f32 0.0, %v772
    %v774 = vpop.f32.mrf.mxu0
    %775 = vdwg.mxu0
    %776 = vmatpush.bf16.msra.mxu0 0
    %777 = vmatpush.bf16.msra.mxu0 0
    %778 = vmatpush.bf16.msra.mxu0 0
    %779 = vmatpush.bf16.msra.mxu0 0
    %780 = vmatpush.bf16.msra.mxu0 %v751
    %781 = vmatpush.bf16.msra.mxu0 %v749
    %782 = vmatpush.bf16.msra.mxu0 %v747
    %783 = vmatpush.bf16.msra.mxu0 %v745
    %784 = vmatmul.bf16.gmra.mxu0 %v761
    %v785 = vpop.f32.mrf.mxu0
    %v786 = vadd.f32 0.0, %v785
    %v787 = vpop.f32.mrf.mxu0
    %788 = vdwg.mxu0
    %v789 = vxor.u32 %v773, 2147483648
    %v790 = vmul.f32 %v789, 1.442695
    %v791 = vpow.pop %v790
    %v792 = vadd.f32 %v791, 1.0
    %v793 = vrcp.pop %v792
    %v794 = vmul.f32 %v792, %v793
    %v795 = vsub.f32 1.0, %v794
    %v796 = vmul.f32 %v793, %v795
    %v797 = vadd.f32 %v793, %v796
    %vm798 = vweird.f32 %v792
    %vm799 = vweird.f32 %v793
    %vm800 = vmor %vm798, %vm799
    %v801 = vsel %vm800, %v793, %v797
    %v802 = vand.u32 2147483647, %v792
    %vm803 = vcmp.eq.f32.partialorder %v802, 8.507059e+37
    %v804 = vand.u32 %v792, 2147483648
    %v805 = vor.u32 1.1754944e-38, %v804
    %v806 = vsel %vm803, %v805, %v801
    %v807 = vmul.f32 1.0, %v806
    %v808 = vmul.f32 %v773, %v807
    %v809 = vmul.f32 %v808, %v786
    %v810 = vpack.c.bf16 %v809, %v809
    %v811 = vld [vmem:[%s11] sm:$0xf]
    %v812 = vld [vmem:[%s11 + $0x4] sm:$0xf]
    %v813 = vld [vmem:[%s11 + $0x8] sm:$0xf]
    %v814 = vld [vmem:[%s11 + $0xc] sm:$0xf]
    %v815 = vld [vmem:[%s11 + $0x10] sm:$0xf]
    %v816 = vld [vmem:[%s11 + $0x14] sm:$0xf]
    %v817 = vld [vmem:[%s11 + $0x18] sm:$0xf]
    %v818 = vld [vmem:[%s11 + $0x1c] sm:$0xf]
    %v819 = vld [vmem:[%s11 + $0x20] sm:$0xf]
    %v820 = vld [vmem:[%s11 + $0x24] sm:$0xf]
    %v821 = vld [vmem:[%s11 + $0x28] sm:$0xf]
    %v822 = vld [vmem:[%s11 + $0x2c] sm:$0xf]
    %v823 = vld [vmem:[%s11 + $0x30] sm:$0xf]
    %v824 = vld [vmem:[%s11 + $0x34] sm:$0xf]
    %v825 = vld [vmem:[%s11 + $0x38] sm:$0xf]
    %v826 = vld [vmem:[%s11 + $0x3c] sm:$0xf]
    %v843 = vunpack.c.l.b16 %v811
    %v844 = vunpack.c.l.b16 %v812
    %v845 = vunpack.c.l.b16 %v813
    %v846 = vunpack.c.l.b16 %v814
    %v847 = vunpack.c.l.b16 %v815
    %v848 = vunpack.c.l.b16 %v816
    %v849 = vunpack.c.l.b16 %v817
    %v850 = vunpack.c.l.b16 %v818
    %v851 = vunpack.c.l.b16 %v819
    %v852 = vunpack.c.l.b16 %v820
    %v853 = vunpack.c.l.b16 %v821
    %v854 = vunpack.c.l.b16 %v822
    %v855 = vunpack.c.l.b16 %v823
    %v856 = vunpack.c.l.b16 %v824
    %v857 = vunpack.c.l.b16 %v825
    %v858 = vunpack.c.l.b16 %v826
    %v859 = vpack.c.b16 %v844, %v843
    %v860 = vpack.c.b16 %v846, %v845
    %v861 = vpack.c.b16 %v848, %v847
    %v862 = vpack.c.b16 %v850, %v849
    %v863 = vpack.c.b16 %v852, %v851
    %v864 = vpack.c.b16 %v854, %v853
    %v865 = vpack.c.b16 %v856, %v855
    %v866 = vpack.c.b16 %v858, %v857
    %875 = vmatpush.bf16.msra.mxu0 %v866
    %876 = vmatpush.bf16.msra.mxu0 %v865
    %877 = vmatpush.bf16.msra.mxu0 %v864
    %878 = vmatpush.bf16.msra.mxu0 %v863
    %879 = vmatpush.bf16.msra.mxu0 %v862
    %880 = vmatpush.bf16.msra.mxu0 %v861
    %881 = vmatpush.bf16.msra.mxu0 %v860
    %882 = vmatpush.bf16.msra.mxu0 %v859
    %883 = vmatmul.bf16.gmra.mxu0 %v810
    %v884 = vpop.f32.mrf.mxu0
    %v885 = vadd.f32 0.0, %v884
    %v886 = vpop.f32.mrf.mxu0
    %887 = vdwg.mxu0
    %v888 = vmul.f32 %v885, 0.7
    %v889 = vadd.f32 %v688, %v888
    %890 = vst.msk [vmem:[#allocation2] sm:$0xff] %vm54, %v889
    // Predicated region
    $region50: #{tpu_custom_call.1} parent=1 // pred_check
      _
    $region51: #{tpu_custom_call.1} parent=1 // pred_check_branch
      %892 = sbr.rel (0) target = $region53
    $region52: #{tpu_custom_call.1} parent=1 // pred_region
      %894 = vsyncadd [#allocation3], 0
      %s896 = sshll.u32 [#allocation2], 4
      %s897 = int_to_ptr.vmem [resolvable:$true] %s896
      %s898 = sshll.u32 %s12, 4
      %s899 = int_to_ptr.hbm [resolvable:$true] %s898
      %901 = dma.vmem_to_hbm [thread:$0]  %s897, 128, %s899, [#allocation3]
    $region53: #{tpu_custom_call.1} parent=1 // pred_fallthru
      _
    // Predicated region
    $region54: #{tpu_custom_call.1} parent=1 // pred_check
      _
    $region55: #{tpu_custom_call.1} parent=1 // pred_check_branch
      %903 = sbr.rel (0) target = $region57
    $region56: #{tpu_custom_call.1} parent=1 // pred_region
      %905 = dma.done [#allocation3], 128
    $region57: #{tpu_custom_call.1} parent=1 // pred_fallthru
      _
    %906 = vsyncpa [#allocation3], 1

</llo_original>
